<compile_context>
chip_gen: v5e
topology: v5e:2x2
jax: 0.10.0
libtpu: 0.0.40
codegen_flags: <defaults>
</compile_context>

<pallas_src>
import functools

import jax
import jax.numpy as jnp
from jax import lax
from jax.experimental import pallas as pl
from jax.experimental.pallas import tpu as pltpu


_DEG2RAD = jnp.pi / 180.0
_TRUE_KP = (0, 3, 7)          # keypoints that are never projected (kept as target)


# --------------------------------------------------------------------------------------
# Pallas kernel: exact, lane-dense gather of K feature columns from the NCHW feature map.
# --------------------------------------------------------------------------------------
def _gather_kernel(ind_ref, feat_ref, out_ref, *, hw, mask_tail):
    """pred^T(C, K) += feat(C, tHW) . onehot(K, tHW)^T, accumulated over HW tiles."""
    h = pl.program_id(1)

    @pl.when(h == 0)
    def _():
        out_ref[...] = jnp.zeros_like(out_ref)

    feat = feat_ref[0]                               # (C, tHW), native dtype
    idx = ind_ref[0]                                 # (K, 1)   int32
    c, thw = feat.shape
    k = idx.shape[0]
    fdt = feat.dtype

    if mask_tail:
        # Last tile overhangs HW: zero the padded lanes so garbage (possibly NaN) cannot
        # leak through the MXU accumulate (0 * NaN = NaN).  Static: only emitted if needed.
        gpos = lax.broadcasted_iota(jnp.int32, (c, thw), 1) + h * thw
        feat = jnp.where(gpos < hw, feat, jnp.array(0, dtype=fdt))

    # Lane-dense one-hot: onehot[k, p] = (h*tHW + p == ind[k]).  Out-of-tile (and any
    # out-of-range) indices never match -> they gather zeros, matching the previous version.
    local = idx - h * thw                            # (K, 1)
    onehot = (lax.broadcasted_iota(jnp.int32, (k, thw), 1) == local).astype(fdt)

    # (C, tHW) . (K, tHW)^T -> (C, K); f32 accumulation; HIGHEST precision => exact f32 gather.
    out_ref[0, :, :] += lax.dot_general(
        feat, onehot,
        dimension_numbers=(((1,), (1,)), ((), ())),
        preferred_element_type=jnp.float32,
        precision=lax.Precision.HIGHEST)


def _pick_hw_tile(hw, c, itemsize, max_tile_lanes=None):
    """Largest lane-aligned HW tile targeting ~1 MiB of feature bytes per step."""
    cap = max(128, (1 << 20) // max(1, c * itemsize))   # ~1 MiB feature tile
    cap = min(cap, 32768)                                # lane cap (keeps one-hot/iota small)
    if max_tile_lanes is not None:
        cap = min(cap, max_tile_lanes)
    cap = max(128, (cap // 128) * 128)
    if hw <= cap:
        return hw                                        # single full-HW tile (always legal)
    return cap


def gather_feat(output, ind, *, max_tile_lanes=None):
    """pred[b, k, c] = output[b, c, ind[b, k] // W, ind[b, k] % W]   (exact, f32 result)."""
    B, C, H, W = output.shape
    K = ind.shape[1]
    HW = H * W

    if output.dtype != jnp.float32 and output.dtype != jnp.bfloat16:
        output = output.astype(jnp.float32)
    feat = output.reshape(B, C, HW)                      # free reshape: NCHW kept, native dtype
    ind3 = ind.astype(jnp.int32).reshape(B, K, 1)        # (K, 1) index column per batch

    itemsize = feat.dtype.itemsize
    thw = _pick_hw_tile(HW, C, itemsize, max_tile_lanes)
    n_hw = pl.cdiv(HW, thw)
    mask_tail = (HW % thw) != 0

    kernel = functools.partial(_gather_kernel, hw=HW, mask_tail=mask_tail)

    pred_t = pl.pallas_call(
        kernel,
        out_shape=jax.ShapeDtypeStruct((B, C, K), jnp.float32),
        grid_spec=pltpu.PrefetchScalarGridSpec(
            num_scalar_prefetch=0,
            grid=(B, n_hw),
            in_specs=[
                pl.BlockSpec((1, K, 1), lambda b, h: (b, 0, 0)),     # index column
                pl.BlockSpec((1, C, thw), lambda b, h: (b, 0, h)),   # lane-dense feature tile
            ],
            out_specs=pl.BlockSpec((1, C, K), lambda b, h: (b, 0, 0)),
        ),
        compiler_params=pltpu.CompilerParams(
            dimension_semantics=("parallel", "arbitrary"),           # batch parallel, HW reduce
            vmem_limit_bytes=32 * 1024 * 1024),
        cost_estimate=pl.CostEstimate(
            flops=2 * B * C * HW * K,
            transcendentals=0,
            bytes_accessed=B * C * HW * itemsize + B * K * 4 + B * C * K * 4),
    )(ind3, feat)
    return jnp.transpose(pred_t, (0, 2, 1))              # (B, K, C); tiny

# --------------------------------------------------------------------------------------
# VeinStemLoss tail: vectorized projection + masked L1 (K*8-scale elementwise, plain XLA).
# --------------------------------------------------------------------------------------
def _project_and_loss(pred, target, mask):
    """pred/target: (B, K, 16) polar [dist, angle_deg] x 8 keypoints; mask: (B, K) 0/1."""
    B, K, C = pred.shape
    assert C == 16, "VeinStemLoss default layout is 8 keypoints x (dist, angle)"
    m = mask.astype(jnp.float32)[:, :, None]                         # expanded mask (B, K, 1)
    pred_m = pred * m
    tgt_m = target * m

    # polar -> cartesian
    pr = pred_m.reshape(B, K, 8, 2)
    tr = tgt_m.reshape(B, K, 8, 2)
    pa = pr[..., 1] * _DEG2RAD
    px, py = pr[..., 0] * jnp.cos(pa), pr[..., 0] * jnp.sin(pa)      # (B, K, 8)
    ta = tr[..., 1] * _DEG2RAD
    tx, ty = tr[..., 0] * jnp.cos(ta), tr[..., 0] * jnp.sin(ta)

    # neighbouring target keypoints (rows 0/7 wrap, but those are true keypoints -> unused)
    txp, typ = jnp.roll(tx, 1, axis=2), jnp.roll(ty, 1, axis=2)
    txn, tyn = jnp.roll(tx, -1, axis=2), jnp.roll(ty, -1, axis=2)

    def _closest_on_segment(ax, ay, bx, by):
        abx, aby = bx - ax, by - ay
        t = ((px - ax) * abx + (py - ay) * aby) / (abx * abx + aby * aby)
        t = jnp.clip(t, 0.0, 1.0)                                    # degenerate segment -> nan
        cx, cy = ax + t * abx, ay + t * aby
        return cx, cy, (px - cx) ** 2 + (py - cy) ** 2

    c1x, c1y, d1 = _closest_on_segment(txp, typ, tx, ty)             # segment (t[j-1], t[j])
    c2x, c2y, d2 = _closest_on_segment(tx, ty, txn, tyn)             # segment (t[j], t[j+1])
    # nan d1 (degenerate first segment) must never win; both-degenerate implies equal
    # neighbours which is handled by keep_t below (matches the PyTorch loop ordering).
    use2 = d2 < jnp.where(jnp.isnan(d1), jnp.inf, d1)
    sx = jnp.where(use2, c2x, c1x)
    sy = jnp.where(use2, c2y, c1y)

    kp = jnp.arange(8)
    keep_t = (kp == _TRUE_KP[0]) | (kp == _TRUE_KP[1]) | (kp == _TRUE_KP[2])
    keep_t = keep_t[None, None, :] | ((txp == txn) & (typ == tyn))   # equal neighbours -> target
    projx = jnp.where(keep_t, tx, sx)
    projy = jnp.where(keep_t, ty, sy)
    slot_on = m > 0.0
    projx = jnp.where(slot_on, projx, 0.0)
    projy = jnp.where(slot_on, projy, 0.0)

    # cartesian -> polar (degrees wrapped to [0, 360))
    dist = jnp.sqrt(projx * projx + projy * projy)
    ang = jnp.arctan2(projy, projx) / _DEG2RAD
    ang = jnp.where(ang < 0.0, ang + 360.0, ang)
    proj = jnp.stack([dist, ang], axis=-1).reshape(B, K, C)

    # L1(pred_m * m, proj * m), sum reduction; mask is 0/1 so factor it out of |.|
    num = jnp.sum(m * jnp.abs(pred_m - proj))
    den = jnp.sum(m) * C + 1e-4                                      # expanded-mask sum
    return num / den


@jax.jit
def vein_stem_loss(output, mask, ind, target):
    """VeinStemLoss forward: output (B,C,H,W), mask (B,K), ind (B,K) int, target (B,K,C)."""
    pred = gather_feat(output, ind)                                  # Pallas gather kernel
    return _project_and_loss(pred, target.astype(jnp.float32), mask)


# --------------------------------------------------------------------------------------
# Pure-JAX reference (independent gather) for validation.
# --------------------------------------------------------------------------------------
def _ref_gather(output, ind):
    B, C, H, W = output.shape
    feat = jnp.transpose(output, (0, 2, 3, 1)).reshape(B, H * W, C).astype(jnp.float32)
    idx = jnp.broadcast_to(ind[..., None].astype(jnp.int32), (B, ind.shape[1], C))
    return jnp.take_along_axis(feat, idx, axis=1)


def _ref_loss(output, mask, ind, target):
    return _project_and_loss(_ref_gather(output, ind), target.astype(jnp.float32), mask)


if __name__ == "__main__":
    # 8 keypoints x (dist, angle) => C = 16; small CenterNet-style shapes.
    B, C, H, W, K = 2, 16, 16, 16, 8
    key = jax.random.PRNGKey(0)
    k1, k2, k3, k4, k5, k6, k7 = jax.random.split(key, 7)

    output = jax.random.normal(k1, (B, C, H, W), dtype=jnp.float32)
    dist = jax.random.uniform(k2, (B, K, 8), minval=0.5, maxval=3.0)
    ang = jax.random.uniform(k3, (B, K, 8), minval=0.0, maxval=360.0)
    target = jnp.stack([dist, ang], axis=-1).reshape(B, K, C).astype(jnp.float32)
    ind = jax.random.randint(k4, (B, K), 0, H * W).astype(jnp.int32)
    mask = (jax.random.uniform(k5, (B, K)) > 0.3).astype(jnp.float32)

    loss = vein_stem_loss(output, mask, ind, target)
    loss = jax.block_until_ready(loss)

    # Validate the Pallas gather (precision=HIGHEST one-hot contraction is exact for f32,
    # so the tolerance is effectively bit-level) and the end-to-end loss.
    pred_k = jax.block_until_ready(gather_feat(output, ind))
    pred_r = _ref_gather(output, ind)
    assert jnp.allclose(pred_k, pred_r, rtol=0.0, atol=1e-6), "gather mismatch"

    ref = _ref_loss(output, mask, ind, target)
    assert jnp.isfinite(loss), loss
    assert jnp.allclose(loss, ref, rtol=1e-4, atol=1e-5), (loss, ref)

    # Exercise the multi-tile accumulation + padded-tail path (HW not a multiple of the tile).
    H2, W2 = 23, 17                                                  # HW = 391
    out2 = jax.random.normal(k6, (B, C, H2, W2), dtype=jnp.float32)
    ind2 = jax.random.randint(k7, (B, K), 0, H2 * W2).astype(jnp.int32)
    p2 = jax.block_until_ready(gather_feat(out2, ind2, max_tile_lanes=128))
    r2 = _ref_gather(out2, ind2)
    assert jnp.allclose(p2, r2, rtol=0.0, atol=1e-6), "tail-tile gather mismatch"

    print("KERNEL_OK")
</pallas_src>

<mosaic_0001>
module attributes {stable_mosaic.version = 11 : i64} {
  func.func @_gather_kernel(%arg0: i32, %arg1: i32, %arg2: memref<1x8x1xi32, #tpu.memory_space<vmem>>, %arg3: memref<1x16x256xf32, #tpu.memory_space<vmem>>, %arg4: memref<1x16x8xf32, #tpu.memory_space<vmem>>) attributes {dimension_semantics = [#tpu.dimension_semantics<parallel>, #tpu.dimension_semantics<arbitrary>], iteration_bounds = array<i64: 2, 1>, scalar_prefetch = 0 : i64, scratch_operands = 0 : i64, tpu.core_type = #tpu.core_type<tc>, window_params = [{transform_indices = @transform_0, window_bounds = array<i64: 1, 8, 1>}, {transform_indices = @transform_1, window_bounds = array<i64: 1, 16, 256>}, {transform_indices = @transform_2, window_bounds = array<i64: 1, 16, 8>}]} {
    %c0_i32 = arith.constant 0 : i32
    %0 = arith.cmpi eq, %arg1, %c0_i32 : i32
    %1 = arith.extui %0 : i1 to i32
    %c0_i32_0 = arith.constant 0 : i32
    %2 = arith.cmpi ne, %1, %c0_i32_0 : i32
    scf.if %2 {
      %cst_12 = arith.constant 0.000000e+00 : f32
      %22 = vector.broadcast %cst_12 : f32 to vector<1x16x8xf32>
      %c0_13 = arith.constant 0 : index
      %c0_14 = arith.constant 0 : index
      %c0_15 = arith.constant 0 : index
      %23 = vector.load %arg4[%c0_13, %c0_14, %c0_15] : memref<1x16x8xf32, #tpu.memory_space<vmem>>, vector<1x16x8xf32>
      tpu.vector_store %arg4[%c0_13, %c0_14, %c0_15], %22 {strides = array<i32>} : memref<1x16x8xf32, #tpu.memory_space<vmem>>, vector<1x16x8xf32>,
    } else {
    }
    %c0 = arith.constant 0 : index
    %c0_1 = arith.constant 0 : index
    %c0_2 = arith.constant 0 : index
    %3 = vector.load %arg3[%c0, %c0_1, %c0_2] : memref<1x16x256xf32, #tpu.memory_space<vmem>>, vector<1x16x256xf32>
    %4 = vector.shape_cast %3 : vector<1x16x256xf32> to vector<16x256xf32>
    %c0_3 = arith.constant 0 : index
    %c0_4 = arith.constant 0 : index
    %c0_5 = arith.constant 0 : index
    %5 = vector.load %arg2[%c0_3, %c0_4, %c0_5] : memref<1x8x1xi32, #tpu.memory_space<vmem>>, vector<1x8x1xi32>
    %6 = vector.shape_cast %5 : vector<1x8x1xi32> to vector<8x1xi32>
    %c256_i32 = arith.constant 256 : i32
    %7 = arith.muli %arg1, %c256_i32 : i32
    %8 = vector.broadcast %7 : i32 to vector<8x1xi32>
    %9 = arith.subi %6, %8 : vector<8x1xi32>
    %10 = tpu.iota {dimensions = array<i32: 1>} : vector<8x256xi32>
    %11 = vector.broadcast %9 : vector<8x1xi32> to vector<8x256xi32>
    %12 = arith.cmpi eq, %10, %11 : vector<8x256xi32>
    %13 = arith.extui %12 : vector<8x256xi1> to vector<8x256xi32>
    %14 = arith.sitofp %13 : vector<8x256xi32> to vector<8x256xf32>
    %c0_6 = arith.constant 0 : index
    %c0_7 = arith.constant 0 : index
    %c0_8 = arith.constant 0 : index
    %15 = vector.load %arg4[%c0_6, %c0_7, %c0_8] : memref<1x16x8xf32, #tpu.memory_space<vmem>>, vector<1x16x8xf32>
    %16 = vector.shape_cast %15 : vector<1x16x8xf32> to vector<16x8xf32>
    %cst = arith.constant dense<0.000000e+00> : vector<16x8xf32>
    %17 = tpu.matmul %4, %14, %cst {dimension_numbers = #tpu.dot_dimension_numbers<[1], [1], [0], [0], [0, 0, 1, 0], [], []>, precision = #tpu.contract_precision<fp32>} : vector<16x256xf32>, vector<8x256xf32>, vector<16x8xf32> -> vector<16x8xf32>
    %18 = arith.addf %16, %17 : vector<16x8xf32>
    %c0_9 = arith.constant 0 : index
    %c0_10 = arith.constant 0 : index
    %c0_11 = arith.constant 0 : index
    %19 = vector.load %arg4[%c0_9, %c0_10, %c0_11] : memref<1x16x8xf32, #tpu.memory_space<vmem>>, vector<1x16x8xf32>
    %20 = vector.shape_cast %19 : vector<1x16x8xf32> to vector<16x8xf32>
    %21 = vector.shape_cast %18 : vector<16x8xf32> to vector<1x16x8xf32>
    tpu.vector_store %arg4[%c0_9, %c0_10, %c0_11], %21 {strides = array<i32>} : memref<1x16x8xf32, #tpu.memory_space<vmem>>, vector<1x16x8xf32>,
    return
  }
  func.func @transform_0(%arg0: i32, %arg1: i32) -> (i32, i32, i32) {
    %c0_i32 = arith.constant 0 : i32
    %c0_i32_0 = arith.constant 0 : i32
    %c0_i32_1 = arith.constant 0 : i32
    return %arg0, %c0_i32, %c0_i32_0 : i32, i32, i32
  }
  func.func @transform_1(%arg0: i32, %arg1: i32) -> (i32, i32, i32) {
    %c0_i32 = arith.constant 0 : i32
    %c0_i32_0 = arith.constant 0 : i32
    return %arg0, %c0_i32, %arg1 : i32, i32, i32
  }
  func.func @transform_2(%arg0: i32, %arg1: i32) -> (i32, i32, i32) {
    %c0_i32 = arith.constant 0 : i32
    %c0_i32_0 = arith.constant 0 : i32
    %c0_i32_1 = arith.constant 0 : i32
    return %arg0, %c0_i32, %c0_i32_0 : i32, i32, i32
  }
}

</mosaic_0001>

<llo_original>
// kernel: vein_stem_loss.1
$region0: #{vein_stem_loss.1}
  #allocation0 [shape = 'u32[]', space=smem, size = 0x4, offset = 0x4, fixed_abs, tag = 'smem constant byte address 0x4 - core index']
  #allocation1 [shape = 'u32[72,128]{1,0:T(1,128)}', space=vmem, size = 0x9000, scoped, tag = 'internal scratch']
  %s0 = inlined_call_operand.vmem [shape: s32[2,8,1], index: 0, kind: input, shape index: {}]
  %s1 = inlined_call_operand.vmem [shape: f32[2,16,256], index: 1, kind: input, shape index: {}]
  %s2 = inlined_call_operand.vmem [shape: f32[2,16,8], index: 2, kind: output, shape index: {}]
  %s3 = sld [smem:[#allocation0]]
  $region45: #{vein_stem_loss.1} parent=0
    _
  %s5 = ssub.s32 1, %s3
  %s6 = scalar_select 0, %s5, %s3
  loop: start=0, step=1, limit=4
  $region2: #{vein_stem_loss.1} parent=0 // loop_pre_header
    _
  $region3: #{vein_stem_loss.1} parent=0 // loop_header
    %s8 = sphi 0, %s12
    %p9 = scmp.ge.s32.totalorder %s8, 4
    %s15 = sphi 0, %s27
    %s16 = sphi 0, %s23
    %s17 = sphi 0, %s15
    %s18 = sphi 0, %s16
    %s19 = sphi 0, %s17
    %s20 = sphi 0, %s18
    %s30 = sphi 0, %s32
    %s33 = sphi 0, %s30
    %s34 = sphi 0, %s33
    %s50 = sphi 0, %s34
    %s58 = sphi 0, %s60
    %s61 = sphi 0, %s58
    %s62 = sphi 0, %s61
    %s78 = sphi 0, %s62
    %s84 = sphi 0, %s86
    %s87 = sphi 0, %s84
    %s88 = sphi 0, %s87
    %s104 = sphi 0, %s88
  $region4: #{vein_stem_loss.1} parent=0 // loop_header_branch
    %11 = sbr.rel (%p9) target = $region8
  $region5: #{vein_stem_loss.1} parent=0 // loop_body
    %s13 = ssub.s32 %s8, 1
    %s14 = ssub.s32 %s8, 2
    %s21 = sadd.s32 1, %s16
    %p22 = scmp.ge.s32.totalorder %s21, 1
    %s23 = scalar_select %p22, 0, %s21
    %s24 = sadd.s32 1, %s15
    %s25 = scalar_select %p22, %s24, %s15
    %p26 = scmp.ge.s32.totalorder %s25, 2
    %s27 = scalar_select %p26, 0, %s25
    %s28 = ssub.s32 %s15, %s27
    %p29 = scmp.eq.s32.totalorder %s28, 0
    %s31 = sadd.s32 %s30, 1
    %s32 = scalar_select %p29, %s30, %s31
    %p35 = pneg %p29
    %p36 = scmp.eq.s32.totalorder %s8, 1
    %p37 = por %p35, %p36
    %p38 = scmp.ne.s32.totalorder %s30, %s33
    %p39 = scmp.eq.s32.totalorder %s8, 0
    %p40 = por %p38, %p39
    %p41 = scmp.ne.s32.totalorder %s30, %s33
    %p42 = scmp.eq.s32.totalorder %s13, 1
    %p43 = por %p41, %p42
    %p44 = scmp.ne.s32.totalorder %s33, %s34
    %p45 = scmp.eq.s32.totalorder %s13, 0
    %p46 = por %p44, %p45
    %p47 = scmp.ne.s32.totalorder %s33, %s34
    %p48 = scmp.eq.s32.totalorder %s14, 1
    %p49 = por %p47, %p48
    %p51 = scmp.ne.s32.totalorder %s34, %s50
    %p52 = scmp.eq.s32.totalorder %s14, 0
    %p53 = por %p51, %p52
    %s54 = ssub.s32 %s15, %s27
    %s55 = ssub.s32 %s16, %s23
    %s56 = sor.u32 %s54, %s55
    %p57 = scmp.eq.s32.totalorder %s56, 0
    %s59 = sadd.s32 %s58, 1
    %s60 = scalar_select %p57, %s58, %s59
    %p63 = pneg %p57
    %p64 = scmp.eq.s32.totalorder %s8, 1
    %p65 = por %p63, %p64
    %p66 = scmp.ne.s32.totalorder %s58, %s61
    %p67 = scmp.eq.s32.totalorder %s8, 0
    %p68 = por %p66, %p67
    %p69 = scmp.ne.s32.totalorder %s58, %s61
    %p70 = scmp.eq.s32.totalorder %s13, 1
    %p71 = por %p69, %p70
    %p72 = scmp.ne.s32.totalorder %s61, %s62
    %p73 = scmp.eq.s32.totalorder %s13, 0
    %p74 = por %p72, %p73
    %p75 = scmp.ne.s32.totalorder %s61, %s62
    %p76 = scmp.eq.s32.totalorder %s14, 1
    %p77 = por %p75, %p76
    %p79 = scmp.ne.s32.totalorder %s62, %s78
    %p80 = scmp.eq.s32.totalorder %s14, 0
    %p81 = por %p79, %p80
    %s82 = ssub.s32 %s15, %s27
    %p83 = scmp.eq.s32.totalorder %s82, 0
    %s85 = sadd.s32 %s84, 1
    %s86 = scalar_select %p83, %s84, %s85
    %p89 = pneg %p83
    %p90 = scmp.eq.s32.totalorder %s8, 1
    %p91 = por %p89, %p90
    %p92 = scmp.ne.s32.totalorder %s84, %s87
    %p93 = scmp.eq.s32.totalorder %s8, 0
    %p94 = por %p92, %p93
    %p95 = scmp.ne.s32.totalorder %s84, %s87
    %p96 = scmp.eq.s32.totalorder %s13, 1
    %p97 = por %p95, %p96
    %p98 = scmp.ne.s32.totalorder %s87, %s88
    %p99 = scmp.eq.s32.totalorder %s13, 0
    %p100 = por %p98, %p99
    %p101 = scmp.ne.s32.totalorder %s87, %s88
    %p102 = scmp.eq.s32.totalorder %s14, 1
    %p103 = por %p101, %p102
    %p105 = scmp.ne.s32.totalorder %s88, %s104
    %p106 = scmp.eq.s32.totalorder %s14, 0
    %p107 = por %p105, %p106
    %p108 = scmp.le.s32.totalorder 1, %s8
    %p109 = scmp.lt.s32.totalorder %s8, 3
    %p110 = pnand %p108, %p109
    %p111 = pneg %p110
    // Predicated region
    $region9: #{vein_stem_loss.1} parent=5 // pred_check
      _
    $region10: #{vein_stem_loss.1} parent=5 // pred_check_branch
      %113 = sbr.rel (%p110) target = $region12
    $region11: #{vein_stem_loss.1} parent=5 // pred_region
      %s114 = ssub.s32 %s8, 1
    $region12: #{vein_stem_loss.1} parent=5 // pred_fallthru
      _
    %p115 = scmp.lt.s32.totalorder %s8, 2
    // Predicated region
    $region13: #{vein_stem_loss.1} parent=5 // pred_check
      %p116 = pneg %p115
    $region14: #{vein_stem_loss.1} parent=5 // pred_check_branch
      %118 = sbr.rel (%p116) target = $region16
    $region15: #{vein_stem_loss.1} parent=5 // pred_region
      // Predicated region
      $region17: #{vein_stem_loss.1} parent=15 // pred_check
        %p119 = pneg %p40
      $region18: #{vein_stem_loss.1} parent=15 // pred_check_branch
        %121 = sbr.rel (%p119) target = $region20
      $region19: #{vein_stem_loss.1} parent=15 // pred_region
        %p122 = scmp.lt.s32.totalorder %s15, 1
        %s123 = scalar_select %p122, %s15, 1
        %s124 = smul.addr %s123, 8
        %s125 = scalar_lea.vmem %s0, %s124
      $region20: #{vein_stem_loss.1} parent=15 // pred_fallthru
        _
      // Predicated region
      $region21: #{vein_stem_loss.1} parent=15 // pred_check
        %p126 = pneg %p68
      $region22: #{vein_stem_loss.1} parent=15 // pred_check_branch
        %128 = sbr.rel (%p126) target = $region24
      $region23: #{vein_stem_loss.1} parent=15 // pred_region
        %s129 = smul.u32 2, %s16
        %p130 = scmp.lt.s32.totalorder %s15, 1
        %s131 = scalar_select %p130, %s15, 1
        %p132 = scmp.lt.s32.totalorder %s129, 1
        %s133 = scalar_select %p132, %s129, 1
        %s134 = smul.addr %s131, 4
        %s135 = sadd.s32 %s133, %s134
        %s136 = smul.addr %s135, 8
        %s137 = scalar_lea.vmem %s1, %s136
        %s138 = smul.u32 2, %s16
      $region24: #{vein_stem_loss.1} parent=15 // pred_fallthru
        _
    $region16: #{vein_stem_loss.1} parent=5 // pred_fallthru
      _
    %p139 = scmp.le.s32.totalorder 1, %s8
    %p140 = scmp.lt.s32.totalorder %s8, 3
    %p141 = pnand %p139, %p140
    %p142 = pneg %p141
    // Predicated region
    $region25: #{vein_stem_loss.1} parent=5 // pred_check
      _
    $region26: #{vein_stem_loss.1} parent=5 // pred_check_branch
      %144 = sbr.rel (%p141) target = $region28
    $region27: #{vein_stem_loss.1} parent=5 // pred_region
      %s145 = ssub.s32 %s8, 1
      %p146 = scmp.lt.s32.totalorder %s17, 1
      %s147 = scalar_select %p146, %s17, 1
      %s148 = smul.addr %s147, 8
      %s149 = scalar_lea.vmem %s0, %s148
      %p150 = pneg %p46
      %p151 = pneg %p43
      %s152 = smul.u32 2, %s18
      %p153 = scmp.lt.s32.totalorder %s17, 1
      %s154 = scalar_select %p153, %s17, 1
      %p155 = scmp.lt.s32.totalorder %s152, 1
      %s156 = scalar_select %p155, %s152, 1
      %s157 = smul.addr %s154, 4
      %s158 = sadd.s32 %s156, %s157
      %s159 = smul.addr %s158, 8
      %s160 = scalar_lea.vmem %s1, %s159
      %p161 = pneg %p74
      %p162 = pneg %p71
      %p163 = pneg %p100
      %p164 = pneg %p97
      %p165 = scmp.lt.s32.totalorder %s17, 1
      %s166 = scalar_select %p165, %s17, 1
      %s167 = smul.addr %s166, 2
      %s168 = smul.addr %s167, 8
      %s169 = scalar_lea.vmem %s2, %s168
      %p170 = scmp.lt.s32.totalorder %s17, 1
      %s171 = scalar_select %p170, %s17, 1
      %s172 = smul.addr %s171, 8
      %s173 = scalar_lea.vmem %s0, %s172
      %s174 = smul.u32 2, %s18
      %p175 = scmp.lt.s32.totalorder %s17, 1
      %s176 = scalar_select %p175, %s17, 1
      %p177 = scmp.lt.s32.totalorder %s174, 1
      %s178 = scalar_select %p177, %s174, 1
      %s179 = smul.addr %s176, 4
      %s180 = sadd.s32 %s178, %s179
      %s181 = smul.addr %s180, 8
      %s182 = scalar_lea.vmem %s1, %s181
      %s183 = smul.u32 2, %s18
      %p184 = scmp.lt.s32.totalorder %s17, 1
      %s185 = scalar_select %p184, %s17, 1
      %s186 = smul.addr %s185, 2
      %s187 = smul.addr %s186, 8
      %s188 = scalar_lea.vmem %s2, %s187
      %p189 = scmp.eq.s32.totalorder %s18, 0
      // Predicated region
      $region29: #{vein_stem_loss.1} parent=27 // pred_check
        %p190 = pneg %p189
      $region30: #{vein_stem_loss.1} parent=27 // pred_check_branch
        %192 = sbr.rel (%p190) target = $region32
      $region31: #{vein_stem_loss.1} parent=27 // pred_region
        %vm193 = vcmask 64512
        %194 = vst.msk [vmem:[%s188] sm:$0xff] %vm193, 0.0
        %195 = vst.msk [vmem:[%s188 + $0x8] sm:$0xff] %vm193, 0.0
      $region32: #{vein_stem_loss.1} parent=27 // pred_fallthru
        _
      %v196 = vld [vmem:[%s182] sm:$0xff]
      %v197 = vld [vmem:[%s182 + $0x8] sm:$0xff]
      %v198 = vld [vmem:[%s182 + $0x10] sm:$0xff]
      %v199 = vld [vmem:[%s182 + $0x18] sm:$0xff]
      %v200 = vld [vmem:[%s173] sm:$0xff]
      %s201 = smul.u32 %s18, 256
      %v202 = vstv %s201
      %v203 = vsub.s32 %v200, %v202
      %v204 = vlaneseq
      %v205 = vand.u32 %v204, 127
      %v206 = vadd.s32 %v205, 128
      %207 = vset.pattern.permute.xlu0 0
      %208 = vperm.xlu0 %207, %v203
      %v209 = vpop.permute.xlu0 %208
      %vm210 = vcmp.eq.s32.totalorder %v205, %v209
      %vm211 = vcmp.eq.s32.totalorder %v206, %v209
      %v212 = vsel %vm210, 1, 0
      %v213 = vsel %vm211, 1, 0
      %v214 = vcvt.s32.f32 %v212
      %v215 = vcvt.s32.f32 %v213
      %v216 = vld [vmem:[%s188] sm:$0xff]
      %v217 = vld [vmem:[%s188 + $0x8] sm:$0xff]
      %218 = vmatpush.xpose.msra.mxu0 0.0
      %219 = vmatpush.xpose.msra.mxu0 0.0
      %220 = vmatpush.xpose.msra.mxu0 0.0
      %221 = vmatpush.xpose.msra.mxu0 0.0
      %222 = vmatpush.xpose.msra.mxu0 0.0
      %223 = vmatpush.xpose.msra.mxu0 0.0
      %224 = vmatpush.xpose.msra.mxu0 0.0
      %225 = vmatpush.xpose.msra.mxu0 0.0
      %226 = vmatpush.xpose.msra.mxu0 0.0
      %227 = vmatpush.xpose.msra.mxu0 0.0
      %228 = vmatpush.xpose.msra.mxu0 0.0
      %229 = vmatpush.xpose.msra.mxu0 0.0
      %230 = vmatpush.xpose.msra.mxu0 0.0
      %231 = vmatpush.xpose.msra.mxu0 0.0
      %232 = vmatpush.xpose.msra.mxu0 0.0
      %v233 = vand.u32 %v214, 4294901760
      %234 = vmatpush.xpose.msra.mxu0 %v233
      %v235 = vand.u32 %v196, 4294901760
      %v236 = vsub.f32 %v196, %v235
      %v237 = vand.u32 %v236, 4294901760
      %v238 = vsub.f32 %v236, %v237
      %v239 = vand.u32 %v238, 4294901760
      %240 = vmatmul.f32.gmra.mxu0 %v239
      %v241 = vpop.f32.mrf.mxu0
      %v242 = vadd.f32 0.0, %v241
      %v243 = vand.u32 %v198, 4294901760
      %v244 = vsub.f32 %v198, %v243
      %v245 = vand.u32 %v244, 4294901760
      %v246 = vsub.f32 %v244, %v245
      %v247 = vand.u32 %v246, 4294901760
      %248 = vmatmul.f32.gmra.mxu0 %v247
      %v249 = vpop.f32.mrf.mxu0
      %v250 = vadd.f32 0.0, %v249
      %251 = vdwg.mxu0
      %252 = vmatpush.xpose.msra.mxu0 0.0
      %253 = vmatpush.xpose.msra.mxu0 0.0
      %254 = vmatpush.xpose.msra.mxu0 0.0
      %255 = vmatpush.xpose.msra.mxu0 0.0
      %256 = vmatpush.xpose.msra.mxu0 0.0
      %257 = vmatpush.xpose.msra.mxu0 0.0
      %258 = vmatpush.xpose.msra.mxu0 0.0
      %259 = vmatpush.xpose.msra.mxu0 0.0
      %260 = vmatpush.xpose.msra.mxu0 0.0
      %261 = vmatpush.xpose.msra.mxu0 0.0
      %262 = vmatpush.xpose.msra.mxu0 0.0
      %263 = vmatpush.xpose.msra.mxu0 0.0
      %264 = vmatpush.xpose.msra.mxu0 0.0
      %265 = vmatpush.xpose.msra.mxu0 0.0
      %266 = vmatpush.xpose.msra.mxu0 0.0
      %v267 = vand.u32 %v214, 4294901760
      %v268 = vsub.f32 %v214, %v267
      %v269 = vand.u32 %v268, 4294901760
      %v270 = vsub.f32 %v268, %v269
      %v271 = vand.u32 %v270, 4294901760
      %272 = vmatpush.xpose.msra.mxu0 %v271
      %v273 = vand.u32 %v196, 4294901760
      %274 = vmatmul.f32.gmra.mxu0 %v273
      %v275 = vpop.f32.mrf.mxu0
      %v276 = vadd.f32 %v242, %v275
      %v277 = vand.u32 %v198, 4294901760
      %278 = vmatmul.f32.gmra.mxu0 %v277
      %v279 = vpop.f32.mrf.mxu0
      %v280 = vadd.f32 %v250, %v279
      %281 = vdwg.mxu0
      %282 = vmatpush.xpose.msra.mxu0 0.0
      %283 = vmatpush.xpose.msra.mxu0 0.0
      %284 = vmatpush.xpose.msra.mxu0 0.0
      %285 = vmatpush.xpose.msra.mxu0 0.0
      %286 = vmatpush.xpose.msra.mxu0 0.0
      %287 = vmatpush.xpose.msra.mxu0 0.0
      %288 = vmatpush.xpose.msra.mxu0 0.0
      %289 = vmatpush.xpose.msra.mxu0 0.0
      %290 = vmatpush.xpose.msra.mxu0 0.0
      %291 = vmatpush.xpose.msra.mxu0 0.0
      %292 = vmatpush.xpose.msra.mxu0 0.0
      %293 = vmatpush.xpose.msra.mxu0 0.0
      %294 = vmatpush.xpose.msra.mxu0 0.0
      %295 = vmatpush.xpose.msra.mxu0 0.0
      %296 = vmatpush.xpose.msra.mxu0 0.0
      %v297 = vand.u32 %v214, 4294901760
      %v298 = vsub.f32 %v214, %v297
      %299 = vmatpush.xpose.msra.mxu0 %v298
      %v300 = vand.u32 %v196, 4294901760
      %v301 = vsub.f32 %v196, %v300
      %302 = vmatmul.f32.gmra.mxu0 %v301
      %v303 = vpop.f32.mrf.mxu0
      %v304 = vadd.f32 %v276, %v303
      %v305 = vand.u32 %v198, 4294901760
      %v306 = vsub.f32 %v198, %v305
      %307 = vmatmul.f32.gmra.mxu0 %v306
      %v308 = vpop.f32.mrf.mxu0
      %v309 = vadd.f32 %v280, %v308
      %310 = vdwg.mxu0
      %311 = vmatpush.xpose.msra.mxu0 0.0
      %312 = vmatpush.xpose.msra.mxu0 0.0
      %313 = vmatpush.xpose.msra.mxu0 0.0
      %314 = vmatpush.xpose.msra.mxu0 0.0
      %315 = vmatpush.xpose.msra.mxu0 0.0
      %316 = vmatpush.xpose.msra.mxu0 0.0
      %317 = vmatpush.xpose.msra.mxu0 0.0
      %318 = vmatpush.xpose.msra.mxu0 0.0
      %319 = vmatpush.xpose.msra.mxu0 0.0
      %320 = vmatpush.xpose.msra.mxu0 0.0
      %321 = vmatpush.xpose.msra.mxu0 0.0
      %322 = vmatpush.xpose.msra.mxu0 0.0
      %323 = vmatpush.xpose.msra.mxu0 0.0
      %324 = vmatpush.xpose.msra.mxu0 0.0
      %325 = vmatpush.xpose.msra.mxu0 0.0
      %v326 = vand.u32 %v214, 4294901760
      %327 = vmatpush.xpose.msra.mxu0 %v326
      %v328 = vand.u32 %v196, 4294901760
      %v329 = vsub.f32 %v196, %v328
      %v330 = vand.u32 %v329, 4294901760
      %331 = vmatmul.f32.gmra.mxu0 %v330
      %v332 = vpop.f32.mrf.mxu0
      %v333 = vadd.f32 %v304, %v332
      %v334 = vand.u32 %v198, 4294901760
      %v335 = vsub.f32 %v198, %v334
      %v336 = vand.u32 %v335, 4294901760
      %337 = vmatmul.f32.gmra.mxu0 %v336
      %v338 = vpop.f32.mrf.mxu0
      %v339 = vadd.f32 %v309, %v338
      %340 = vdwg.mxu0
      %341 = vmatpush.xpose.msra.mxu0 0.0
      %342 = vmatpush.xpose.msra.mxu0 0.0
      %343 = vmatpush.xpose.msra.mxu0 0.0
      %344 = vmatpush.xpose.msra.mxu0 0.0
      %345 = vmatpush.xpose.msra.mxu0 0.0
      %346 = vmatpush.xpose.msra.mxu0 0.0
      %347 = vmatpush.xpose.msra.mxu0 0.0
      %348 = vmatpush.xpose.msra.mxu0 0.0
      %349 = vmatpush.xpose.msra.mxu0 0.0
      %350 = vmatpush.xpose.msra.mxu0 0.0
      %351 = vmatpush.xpose.msra.mxu0 0.0
      %352 = vmatpush.xpose.msra.mxu0 0.0
      %353 = vmatpush.xpose.msra.mxu0 0.0
      %354 = vmatpush.xpose.msra.mxu0 0.0
      %355 = vmatpush.xpose.msra.mxu0 0.0
      %v356 = vand.u32 %v214, 4294901760
      %v357 = vsub.f32 %v214, %v356
      %v358 = vand.u32 %v357, 4294901760
      %359 = vmatpush.xpose.msra.mxu0 %v358
      %v360 = vand.u32 %v196, 4294901760
      %361 = vmatmul.f32.gmra.mxu0 %v360
      %v362 = vpop.f32.mrf.mxu0
      %v363 = vadd.f32 %v333, %v362
      %v364 = vand.u32 %v198, 4294901760
      %365 = vmatmul.f32.gmra.mxu0 %v364
      %v366 = vpop.f32.mrf.mxu0
      %v367 = vadd.f32 %v339, %v366
      %368 = vdwg.mxu0
      %369 = vmatpush.xpose.msra.mxu0 0.0
      %370 = vmatpush.xpose.msra.mxu0 0.0
      %371 = vmatpush.xpose.msra.mxu0 0.0
      %372 = vmatpush.xpose.msra.mxu0 0.0
      %373 = vmatpush.xpose.msra.mxu0 0.0
      %374 = vmatpush.xpose.msra.mxu0 0.0
      %375 = vmatpush.xpose.msra.mxu0 0.0
      %376 = vmatpush.xpose.msra.mxu0 0.0
      %377 = vmatpush.xpose.msra.mxu0 0.0
      %378 = vmatpush.xpose.msra.mxu0 0.0
      %379 = vmatpush.xpose.msra.mxu0 0.0
      %380 = vmatpush.xpose.msra.mxu0 0.0
      %381 = vmatpush.xpose.msra.mxu0 0.0
      %382 = vmatpush.xpose.msra.mxu0 0.0
      %383 = vmatpush.xpose.msra.mxu0 0.0
      %v384 = vand.u32 %v214, 4294901760
      %385 = vmatpush.xpose.msra.mxu0 %v384
      %v386 = vand.u32 %v196, 4294901760
      %387 = vmatmul.f32.gmra.mxu0 %v386
      %v388 = vpop.f32.mrf.mxu0
      %v389 = vadd.f32 %v363, %v388
      %v390 = vand.u32 %v198, 4294901760
      %391 = vmatmul.f32.gmra.mxu0 %v390
      %v392 = vpop.f32.mrf.mxu0
      %v393 = vadd.f32 %v367, %v392
      %394 = vdwg.mxu0
      %395 = vmatpush.xpose.msra.mxu0 0.0
      %396 = vmatpush.xpose.msra.mxu0 0.0
      %397 = vmatpush.xpose.msra.mxu0 0.0
      %398 = vmatpush.xpose.msra.mxu0 0.0
      %399 = vmatpush.xpose.msra.mxu0 0.0
      %400 = vmatpush.xpose.msra.mxu0 0.0
      %401 = vmatpush.xpose.msra.mxu0 0.0
      %402 = vmatpush.xpose.msra.mxu0 0.0
      %403 = vmatpush.xpose.msra.mxu0 0.0
      %404 = vmatpush.xpose.msra.mxu0 0.0
      %405 = vmatpush.xpose.msra.mxu0 0.0
      %406 = vmatpush.xpose.msra.mxu0 0.0
      %407 = vmatpush.xpose.msra.mxu0 0.0
      %408 = vmatpush.xpose.msra.mxu0 0.0
      %409 = vmatpush.xpose.msra.mxu0 0.0
      %v410 = vand.u32 %v215, 4294901760
      %411 = vmatpush.xpose.msra.mxu0 %v410
      %v412 = vand.u32 %v197, 4294901760
      %v413 = vsub.f32 %v197, %v412
      %v414 = vand.u32 %v413, 4294901760
      %v415 = vsub.f32 %v413, %v414
      %v416 = vand.u32 %v415, 4294901760
      %417 = vmatmul.f32.gmra.mxu0 %v416
      %v418 = vpop.f32.mrf.mxu0
      %v419 = vadd.f32 %v389, %v418
      %v420 = vand.u32 %v199, 4294901760
      %v421 = vsub.f32 %v199, %v420
      %v422 = vand.u32 %v421, 4294901760
      %v423 = vsub.f32 %v421, %v422
      %v424 = vand.u32 %v423, 4294901760
      %425 = vmatmul.f32.gmra.mxu0 %v424
      %v426 = vpop.f32.mrf.mxu0
      %v427 = vadd.f32 %v393, %v426
      %428 = vdwg.mxu0
      %429 = vmatpush.xpose.msra.mxu0 0.0
      %430 = vmatpush.xpose.msra.mxu0 0.0
      %431 = vmatpush.xpose.msra.mxu0 0.0
      %432 = vmatpush.xpose.msra.mxu0 0.0
      %433 = vmatpush.xpose.msra.mxu0 0.0
      %434 = vmatpush.xpose.msra.mxu0 0.0
      %435 = vmatpush.xpose.msra.mxu0 0.0
      %436 = vmatpush.xpose.msra.mxu0 0.0
      %437 = vmatpush.xpose.msra.mxu0 0.0
      %438 = vmatpush.xpose.msra.mxu0 0.0
      %439 = vmatpush.xpose.msra.mxu0 0.0
      %440 = vmatpush.xpose.msra.mxu0 0.0
      %441 = vmatpush.xpose.msra.mxu0 0.0
      %442 = vmatpush.xpose.msra.mxu0 0.0
      %443 = vmatpush.xpose.msra.mxu0 0.0
      %v444 = vand.u32 %v215, 4294901760
      %v445 = vsub.f32 %v215, %v444
      %v446 = vand.u32 %v445, 4294901760
      %v447 = vsub.f32 %v445, %v446
      %v448 = vand.u32 %v447, 4294901760
      %449 = vmatpush.xpose.msra.mxu0 %v448
      %v450 = vand.u32 %v197, 4294901760
      %451 = vmatmul.f32.gmra.mxu0 %v450
      %v452 = vpop.f32.mrf.mxu0
      %v453 = vadd.f32 %v419, %v452
      %v454 = vand.u32 %v199, 4294901760
      %455 = vmatmul.f32.gmra.mxu0 %v454
      %v456 = vpop.f32.mrf.mxu0
      %v457 = vadd.f32 %v427, %v456
      %458 = vdwg.mxu0
      %459 = vmatpush.xpose.msra.mxu0 0.0
      %460 = vmatpush.xpose.msra.mxu0 0.0
      %461 = vmatpush.xpose.msra.mxu0 0.0
      %462 = vmatpush.xpose.msra.mxu0 0.0
      %463 = vmatpush.xpose.msra.mxu0 0.0
      %464 = vmatpush.xpose.msra.mxu0 0.0
      %465 = vmatpush.xpose.msra.mxu0 0.0
      %466 = vmatpush.xpose.msra.mxu0 0.0
      %467 = vmatpush.xpose.msra.mxu0 0.0
      %468 = vmatpush.xpose.msra.mxu0 0.0
      %469 = vmatpush.xpose.msra.mxu0 0.0
      %470 = vmatpush.xpose.msra.mxu0 0.0
      %471 = vmatpush.xpose.msra.mxu0 0.0
      %472 = vmatpush.xpose.msra.mxu0 0.0
      %473 = vmatpush.xpose.msra.mxu0 0.0
      %v474 = vand.u32 %v215, 4294901760
      %v475 = vsub.f32 %v215, %v474
      %476 = vmatpush.xpose.msra.mxu0 %v475
      %v477 = vand.u32 %v197, 4294901760
      %v478 = vsub.f32 %v197, %v477
      %479 = vmatmul.f32.gmra.mxu0 %v478
      %v480 = vpop.f32.mrf.mxu0
      %v481 = vadd.f32 %v453, %v480
      %v482 = vand.u32 %v199, 4294901760
      %v483 = vsub.f32 %v199, %v482
      %484 = vmatmul.f32.gmra.mxu0 %v483
      %v485 = vpop.f32.mrf.mxu0
      %v486 = vadd.f32 %v457, %v485
      %487 = vdwg.mxu0
      %488 = vmatpush.xpose.msra.mxu0 0.0
      %489 = vmatpush.xpose.msra.mxu0 0.0
      %490 = vmatpush.xpose.msra.mxu0 0.0
      %491 = vmatpush.xpose.msra.mxu0 0.0
      %492 = vmatpush.xpose.msra.mxu0 0.0
      %493 = vmatpush.xpose.msra.mxu0 0.0
      %494 = vmatpush.xpose.msra.mxu0 0.0
      %495 = vmatpush.xpose.msra.mxu0 0.0
      %496 = vmatpush.xpose.msra.mxu0 0.0
      %497 = vmatpush.xpose.msra.mxu0 0.0
      %498 = vmatpush.xpose.msra.mxu0 0.0
      %499 = vmatpush.xpose.msra.mxu0 0.0
      %500 = vmatpush.xpose.msra.mxu0 0.0
      %501 = vmatpush.xpose.msra.mxu0 0.0
      %502 = vmatpush.xpose.msra.mxu0 0.0
      %v503 = vand.u32 %v215, 4294901760
      %504 = vmatpush.xpose.msra.mxu0 %v503
      %v505 = vand.u32 %v197, 4294901760
      %v506 = vsub.f32 %v197, %v505
      %v507 = vand.u32 %v506, 4294901760
      %508 = vmatmul.f32.gmra.mxu0 %v507
      %v509 = vpop.f32.mrf.mxu0
      %v510 = vadd.f32 %v481, %v509
      %v511 = vand.u32 %v199, 4294901760
      %v512 = vsub.f32 %v199, %v511
      %v513 = vand.u32 %v512, 4294901760
      %514 = vmatmul.f32.gmra.mxu0 %v513
      %v515 = vpop.f32.mrf.mxu0
      %v516 = vadd.f32 %v486, %v515
      %517 = vdwg.mxu0
      %518 = vmatpush.xpose.msra.mxu0 0.0
      %519 = vmatpush.xpose.msra.mxu0 0.0
      %520 = vmatpush.xpose.msra.mxu0 0.0
      %521 = vmatpush.xpose.msra.mxu0 0.0
      %522 = vmatpush.xpose.msra.mxu0 0.0
      %523 = vmatpush.xpose.msra.mxu0 0.0
      %524 = vmatpush.xpose.msra.mxu0 0.0
      %525 = vmatpush.xpose.msra.mxu0 0.0
      %526 = vmatpush.xpose.msra.mxu0 0.0
      %527 = vmatpush.xpose.msra.mxu0 0.0
      %528 = vmatpush.xpose.msra.mxu0 0.0
      %529 = vmatpush.xpose.msra.mxu0 0.0
      %530 = vmatpush.xpose.msra.mxu0 0.0
      %531 = vmatpush.xpose.msra.mxu0 0.0
      %532 = vmatpush.xpose.msra.mxu0 0.0
      %v533 = vand.u32 %v215, 4294901760
      %v534 = vsub.f32 %v215, %v533
      %v535 = vand.u32 %v534, 4294901760
      %536 = vmatpush.xpose.msra.mxu0 %v535
      %v537 = vand.u32 %v197, 4294901760
      %538 = vmatmul.f32.gmra.mxu0 %v537
      %v539 = vpop.f32.mrf.mxu0
      %v540 = vadd.f32 %v510, %v539
      %v541 = vand.u32 %v199, 4294901760
      %542 = vmatmul.f32.gmra.mxu0 %v541
      %v543 = vpop.f32.mrf.mxu0
      %v544 = vadd.f32 %v516, %v543
      %545 = vdwg.mxu0
      %546 = vmatpush.xpose.msra.mxu0 0.0
      %547 = vmatpush.xpose.msra.mxu0 0.0
      %548 = vmatpush.xpose.msra.mxu0 0.0
      %549 = vmatpush.xpose.msra.mxu0 0.0
      %550 = vmatpush.xpose.msra.mxu0 0.0
      %551 = vmatpush.xpose.msra.mxu0 0.0
      %552 = vmatpush.xpose.msra.mxu0 0.0
      %553 = vmatpush.xpose.msra.mxu0 0.0
      %554 = vmatpush.xpose.msra.mxu0 0.0
      %555 = vmatpush.xpose.msra.mxu0 0.0
      %556 = vmatpush.xpose.msra.mxu0 0.0
      %557 = vmatpush.xpose.msra.mxu0 0.0
      %558 = vmatpush.xpose.msra.mxu0 0.0
      %559 = vmatpush.xpose.msra.mxu0 0.0
      %560 = vmatpush.xpose.msra.mxu0 0.0
      %v561 = vand.u32 %v215, 4294901760
      %562 = vmatpush.xpose.msra.mxu0 %v561
      %v563 = vand.u32 %v197, 4294901760
      %564 = vmatmul.f32.gmra.mxu0 %v563
      %v565 = vpop.f32.mrf.mxu0
      %v566 = vadd.f32 %v540, %v565
      %v567 = vand.u32 %v199, 4294901760
      %568 = vmatmul.f32.gmra.mxu0 %v567
      %v569 = vpop.f32.mrf.mxu0
      %v570 = vadd.f32 %v544, %v569
      %571 = vdwg.mxu0
      %v572 = vadd.f32 %v216, %v566
      %v573 = vadd.f32 %v217, %v570
      %vm574 = vcmask 64512
      %575 = vst.msk [vmem:[%s188] sm:$0xff] %vm574, %v572
      %576 = vst.msk [vmem:[%s188 + $0x8] sm:$0xff] %vm574, %v573
      %p577 = scmp.lt.s32.totalorder %s17, 1
      %s578 = scalar_select %p577, %s17, 1
      %s579 = smul.addr %s578, 2
      %s580 = smul.addr %s579, 8
      %s581 = scalar_lea.vmem %s2, %s580
      // Predicated region
      $region33: #{vein_stem_loss.1} parent=27 // pred_check
        %p582 = pneg %p97
      $region34: #{vein_stem_loss.1} parent=27 // pred_check_branch
        %584 = sbr.rel (%p582) target = $region36
      $region35: #{vein_stem_loss.1} parent=27 // pred_region
        _
      $region36: #{vein_stem_loss.1} parent=27 // pred_fallthru
        _
    $region28: #{vein_stem_loss.1} parent=5 // pred_fallthru
      _
    %p585 = scmp.le.s32.totalorder 2, %s8
    // Predicated region
    $region37: #{vein_stem_loss.1} parent=5 // pred_check
      %p586 = pneg %p585
    $region38: #{vein_stem_loss.1} parent=5 // pred_check_branch
      %588 = sbr.rel (%p586) target = $region40
    $region39: #{vein_stem_loss.1} parent=5 // pred_region
      %s589 = ssub.s32 %s8, 2
      // Predicated region
      $region41: #{vein_stem_loss.1} parent=39 // pred_check
        %p590 = pneg %p103
      $region42: #{vein_stem_loss.1} parent=39 // pred_check_branch
        %592 = sbr.rel (%p590) target = $region44
      $region43: #{vein_stem_loss.1} parent=39 // pred_region
        %p593 = scmp.lt.s32.totalorder %s19, 1
        %s594 = scalar_select %p593, %s19, 1
        %s595 = smul.addr %s594, 2
        %s596 = smul.addr %s595, 8
        %s597 = scalar_lea.vmem %s2, %s596
      $region44: #{vein_stem_loss.1} parent=39 // pred_fallthru
        _
    $region40: #{vein_stem_loss.1} parent=5 // pred_fallthru
      _
  $region6: #{vein_stem_loss.1} parent=0 // loop_footer
    %s12 = sadd.s32 1, %s8
  $region7: #{vein_stem_loss.1} parent=0 // loop_footer_branch
    %7 = sbr.rel target = $region3
  $region8: #{vein_stem_loss.1} parent=0 // loop_exit
    _

</llo_original>
